<compile_context>
chip_gen: v6e
topology: v6e:2x2x1
jax: 0.10.0
libtpu: 0.0.40
codegen_flags: <defaults>
</compile_context>

<pallas_src>
import itertools

import jax
import jax.numpy as jnp
import numpy as np
from jax.experimental import pallas as pl
from jax.experimental.pallas import tpu as pltpu

LANES = 128  # loss is broadcast across a lane-dense row; wrapper reads lane 0


def _probpit_kernel(x_ref, y_ref, perm_ref, out_ref):
    # x_ref, y_ref : (TB, S, T) block of batch elements (f32)
    # perm_ref     : (S*S, P)   flattened one-hot permutations, row = i*S + j
    # out_ref      : (TB, LANES) per-batch loss broadcast over lanes
    TB, S, T = x_ref.shape
    P = perm_ref.shape[1]
    inv_st = 1.0 / float(S * T)

    # Dense (TB, T) per-source slices; all following math is per-row, lane-dense.
    xs = [x_ref[:, i, :] for i in range(S)]
    ys = [y_ref[:, j, :] for j in range(S)]

    # Permutation-invariant diagonal term: sum_i ||x_i||^2 + sum_j ||y_j||^2.
    ssq = xs[0] * xs[0]
    for i in range(1, S):
        ssq = ssq + xs[i] * xs[i]
    for j in range(S):
        ssq = ssq + ys[j] * ys[j]
    diag = jnp.sum(ssq, axis=-1, keepdims=True)                      # (TB, 1)

    # All S*S cross dots d[b, i*S+j] = <x_i, y_j>_t.
    dots = [jnp.sum(xs[i] * ys[j], axis=-1, keepdims=True)
            for i in range(S) for j in range(S)]
    d = jnp.concatenate(dots, axis=-1)                               # (TB, S*S)

    # V[b, p] = sum_i <x_i, y_{pi_p(i)}> via one small MXU matmul.
    v = jnp.dot(d, perm_ref[...], preferred_element_type=jnp.float32)  # (TB, P)

    # loss = log(S!) + diag/(S*T) - logsumexp_p( 2*V_p/(S*T) )
    z = (2.0 * inv_st) * v                                           # (TB, P)
    m = jnp.max(z, axis=-1, keepdims=True)                           # (TB, 1)
    lse = m + jnp.log(jnp.sum(jnp.exp(z - m), axis=-1, keepdims=True))
    loss = jnp.log(jnp.float32(P)) + inv_st * diag - lse             # (TB, 1)

    out_ref[...] = jnp.broadcast_to(loss, out_ref.shape).astype(out_ref.dtype)


def _perm_onehot_flat(S):
    """(S*S, P) one-hot permutation matrix, row index = i*S + j."""
    perms = list(itertools.permutations(range(S)))
    P = len(perms)
    flat = np.zeros((S * S, P), np.float32)
    for p, pi in enumerate(perms):
        for i, j in enumerate(pi):
            flat[i * S + j, p] = 1.0
    return jnp.asarray(flat)


def _vmem_per_batch_bytes(S, T):
    pad_s = -(-S // 8) * 8  # second-minor dim of the (TB, S, T) block pads to 8 sublanes
    # x,y blocks double-buffered (padded) + dense per-source slice copies
    # + a couple of (TB, T) product temporaries in flight + output / per-row vectors.
    return 4 * (2 * 2 * pad_s * T + 2 * S * T + 4 * T + 4 * LANES)


def _pick_block_b(B, S, T):
    budget = 40 << 20  # keep the working set well inside v7x's 64 MiB VMEM
    cap = max(8, min(512, budget // _vmem_per_batch_bytes(S, T)))
    if B <= 8:
        return B       # single block, block dims == full array dims
    tb = min(cap, -(-B // 2))   # keep >= 2 grid steps so both v7x TensorCores work
    return max(8, (tb // 8) * 8)


def prob_pit_loss(inp, target, batch_mean=True, block_b=None):
    """Pallas Prob-PIT loss.  inp/target: (B, S, T) float32."""
    assert inp.shape == target.shape and inp.ndim == 3
    B, S, T = inp.shape
    inp = inp.astype(jnp.float32)
    target = target.astype(jnp.float32)

    perm_flat = _perm_onehot_flat(S)                                 # (S*S, P)
    P = perm_flat.shape[1]

    TB = _pick_block_b(B, S, T) if block_b is None else int(block_b)
    grid = (pl.cdiv(B, TB),)

    est = _vmem_per_batch_bytes(S, T) * TB + S * S * P * 4 + (1 << 20)
    # 48 MiB cap is safe on v7x (64 MiB physical) and far below v5e/v6e's 128 MiB.
    vmem_limit = int(min(max(est, 32 << 20), 48 << 20))

    out = pl.pallas_call(
        _probpit_kernel,
        out_shape=jax.ShapeDtypeStruct((B, LANES), jnp.float32),
        grid_spec=pltpu.PrefetchScalarGridSpec(
            num_scalar_prefetch=0,
            grid=grid,
            in_specs=[
                pl.BlockSpec((TB, S, T), lambda b: (b, 0, 0)),
                pl.BlockSpec((TB, S, T), lambda b: (b, 0, 0)),
                pl.BlockSpec((S * S, P), lambda b: (0, 0)),   # resident, re-used
            ],
            out_specs=pl.BlockSpec((TB, LANES), lambda b: (b, 0)),
        ),
        compiler_params=pltpu.CompilerParams(
            dimension_semantics=("parallel",),
            vmem_limit_bytes=vmem_limit),
    )(inp, target, perm_flat)

    per_batch = out[:, 0]                                            # (B,)
    return jnp.mean(per_batch) if batch_mean else per_batch


def prob_pit_ref(inp, target, batch_mean=True):
    """Pure-JAX reference (direct-difference pairwise MSE) for correctness."""
    B, S, T = inp.shape
    perms = list(itertools.permutations(range(S)))
    pw = jnp.mean((inp[:, :, None, :] - target[:, None, :, :]) ** 2, axis=-1)  # (B,S,S)
    rows = jnp.arange(S)
    perm_losses = jnp.stack(
        [jnp.mean(pw[:, rows, jnp.asarray(p)], axis=-1) for p in perms], axis=1)  # (B,P)
    z = -perm_losses
    m = jnp.max(z, axis=1, keepdims=True)
    lse = (m + jnp.log(jnp.sum(jnp.exp(z - m), axis=1, keepdims=True)))[:, 0]
    loss = jnp.log(jnp.float32(len(perms))) - lse
    return jnp.mean(loss) if batch_mean else loss


if __name__ == "__main__":
    key = jax.random.PRNGKey(0)
    k1, k2, k3, k4 = jax.random.split(key, 4)

    # Small demo shape: batch=2, 4 sources (4! = 24 permutations), 256 samples.
    B, S, T = 2, 4, 256
    inp = jax.random.normal(k1, (B, S, T), jnp.float32)
    tgt = jax.random.normal(k2, (B, S, T), jnp.float32)

    loss = prob_pit_loss(inp, tgt, batch_mean=True)
    jax.block_until_ready(loss)
    ref = prob_pit_ref(inp, tgt, batch_mean=True)
    assert np.allclose(np.asarray(loss), np.asarray(ref), rtol=1e-4, atol=1e-4), (loss, ref)

    # Second check: odd batch that doesn't divide the block -> exercises the
    # multi-step grid and the masked partial tail block (no host-side padding).
    B2 = 10
    inp2 = jax.random.normal(k3, (B2, S, T), jnp.float32)
    tgt2 = jax.random.normal(k4, (B2, S, T), jnp.float32)
    loss2 = prob_pit_loss(inp2, tgt2, batch_mean=False)
    jax.block_until_ready(loss2)
    ref2 = prob_pit_ref(inp2, tgt2, batch_mean=False)
    assert np.allclose(np.asarray(loss2), np.asarray(ref2), rtol=1e-4, atol=1e-4), (loss2, ref2)

    print("KERNEL_OK")
</pallas_src>

<mosaic_0001>
module attributes {stable_mosaic.version = 11 : i64} {
  func.func @_probpit_kernel(%arg0: i32, %arg1: memref<2x4x256xf32, #tpu.memory_space<vmem>>, %arg2: memref<2x4x256xf32, #tpu.memory_space<vmem>>, %arg3: memref<16x24xf32, #tpu.memory_space<vmem>>, %arg4: memref<2x128xf32, #tpu.memory_space<vmem>>) attributes {dimension_semantics = [#tpu.dimension_semantics<parallel>], iteration_bounds = array<i64: 1>, scalar_prefetch = 0 : i64, scratch_operands = 0 : i64, tpu.core_type = #tpu.core_type<tc>, window_params = [{transform_indices = @transform_0, window_bounds = array<i64: 2, 4, 256>}, {transform_indices = @transform_1, window_bounds = array<i64: 2, 4, 256>}, {pipeline_mode = #tpu.pipeline_mode<synchronous>, transform_indices = @transform_2, window_bounds = array<i64: 16, 24>}, {transform_indices = @transform_3, window_bounds = array<i64: 2, 128>}]} {
    %c0 = arith.constant 0 : index
    %c0_0 = arith.constant 0 : index
    %c0_1 = arith.constant 0 : index
    %0 = vector.load %arg1[%c0, %c0_0, %c0_1] : memref<2x4x256xf32, #tpu.memory_space<vmem>>, vector<2x1x256xf32>
    %1 = vector.shape_cast %0 : vector<2x1x256xf32> to vector<2x256xf32>
    %c0_2 = arith.constant 0 : index
    %c1 = arith.constant 1 : index
    %c0_3 = arith.constant 0 : index
    %2 = vector.load %arg1[%c0_2, %c1, %c0_3] : memref<2x4x256xf32, #tpu.memory_space<vmem>>, vector<2x1x256xf32>
    %3 = vector.shape_cast %2 : vector<2x1x256xf32> to vector<2x256xf32>
    %c0_4 = arith.constant 0 : index
    %c2 = arith.constant 2 : index
    %c0_5 = arith.constant 0 : index
    %4 = vector.load %arg1[%c0_4, %c2, %c0_5] : memref<2x4x256xf32, #tpu.memory_space<vmem>>, vector<2x1x256xf32>
    %5 = vector.shape_cast %4 : vector<2x1x256xf32> to vector<2x256xf32>
    %c0_6 = arith.constant 0 : index
    %c3 = arith.constant 3 : index
    %c0_7 = arith.constant 0 : index
    %6 = vector.load %arg1[%c0_6, %c3, %c0_7] : memref<2x4x256xf32, #tpu.memory_space<vmem>>, vector<2x1x256xf32>
    %7 = vector.shape_cast %6 : vector<2x1x256xf32> to vector<2x256xf32>
    %c0_8 = arith.constant 0 : index
    %c0_9 = arith.constant 0 : index
    %c0_10 = arith.constant 0 : index
    %8 = vector.load %arg2[%c0_8, %c0_9, %c0_10] : memref<2x4x256xf32, #tpu.memory_space<vmem>>, vector<2x1x256xf32>
    %9 = vector.shape_cast %8 : vector<2x1x256xf32> to vector<2x256xf32>
    %c0_11 = arith.constant 0 : index
    %c1_12 = arith.constant 1 : index
    %c0_13 = arith.constant 0 : index
    %10 = vector.load %arg2[%c0_11, %c1_12, %c0_13] : memref<2x4x256xf32, #tpu.memory_space<vmem>>, vector<2x1x256xf32>
    %11 = vector.shape_cast %10 : vector<2x1x256xf32> to vector<2x256xf32>
    %c0_14 = arith.constant 0 : index
    %c2_15 = arith.constant 2 : index
    %c0_16 = arith.constant 0 : index
    %12 = vector.load %arg2[%c0_14, %c2_15, %c0_16] : memref<2x4x256xf32, #tpu.memory_space<vmem>>, vector<2x1x256xf32>
    %13 = vector.shape_cast %12 : vector<2x1x256xf32> to vector<2x256xf32>
    %c0_17 = arith.constant 0 : index
    %c3_18 = arith.constant 3 : index
    %c0_19 = arith.constant 0 : index
    %14 = vector.load %arg2[%c0_17, %c3_18, %c0_19] : memref<2x4x256xf32, #tpu.memory_space<vmem>>, vector<2x1x256xf32>
    %15 = vector.shape_cast %14 : vector<2x1x256xf32> to vector<2x256xf32>
    %16 = arith.mulf %1, %1 : vector<2x256xf32>
    %17 = arith.mulf %3, %3 : vector<2x256xf32>
    %18 = arith.addf %16, %17 : vector<2x256xf32>
    %19 = arith.mulf %5, %5 : vector<2x256xf32>
    %20 = arith.addf %18, %19 : vector<2x256xf32>
    %21 = arith.mulf %7, %7 : vector<2x256xf32>
    %22 = arith.addf %20, %21 : vector<2x256xf32>
    %23 = arith.mulf %9, %9 : vector<2x256xf32>
    %24 = arith.addf %22, %23 : vector<2x256xf32>
    %25 = arith.mulf %11, %11 : vector<2x256xf32>
    %26 = arith.addf %24, %25 : vector<2x256xf32>
    %27 = arith.mulf %13, %13 : vector<2x256xf32>
    %28 = arith.addf %26, %27 : vector<2x256xf32>
    %29 = arith.mulf %15, %15 : vector<2x256xf32>
    %30 = arith.addf %28, %29 : vector<2x256xf32>
    %cst = arith.constant dense<0.000000e+00> : vector<2xf32>
    %31 = vector.multi_reduction <add>, %30, %cst [1] : vector<2x256xf32> to vector<2xf32>
    %32 = vector.shape_cast %31 : vector<2xf32> to vector<2x1xf32>
    %33 = arith.mulf %1, %9 : vector<2x256xf32>
    %cst_20 = arith.constant dense<0.000000e+00> : vector<2xf32>
    %34 = vector.multi_reduction <add>, %33, %cst_20 [1] : vector<2x256xf32> to vector<2xf32>
    %35 = vector.shape_cast %34 : vector<2xf32> to vector<2x1xf32>
    %36 = arith.mulf %1, %11 : vector<2x256xf32>
    %cst_21 = arith.constant dense<0.000000e+00> : vector<2xf32>
    %37 = vector.multi_reduction <add>, %36, %cst_21 [1] : vector<2x256xf32> to vector<2xf32>
    %38 = vector.shape_cast %37 : vector<2xf32> to vector<2x1xf32>
    %39 = arith.mulf %1, %13 : vector<2x256xf32>
    %cst_22 = arith.constant dense<0.000000e+00> : vector<2xf32>
    %40 = vector.multi_reduction <add>, %39, %cst_22 [1] : vector<2x256xf32> to vector<2xf32>
    %41 = vector.shape_cast %40 : vector<2xf32> to vector<2x1xf32>
    %42 = arith.mulf %1, %15 : vector<2x256xf32>
    %cst_23 = arith.constant dense<0.000000e+00> : vector<2xf32>
    %43 = vector.multi_reduction <add>, %42, %cst_23 [1] : vector<2x256xf32> to vector<2xf32>
    %44 = vector.shape_cast %43 : vector<2xf32> to vector<2x1xf32>
    %45 = arith.mulf %3, %9 : vector<2x256xf32>
    %cst_24 = arith.constant dense<0.000000e+00> : vector<2xf32>
    %46 = vector.multi_reduction <add>, %45, %cst_24 [1] : vector<2x256xf32> to vector<2xf32>
    %47 = vector.shape_cast %46 : vector<2xf32> to vector<2x1xf32>
    %48 = arith.mulf %3, %11 : vector<2x256xf32>
    %cst_25 = arith.constant dense<0.000000e+00> : vector<2xf32>
    %49 = vector.multi_reduction <add>, %48, %cst_25 [1] : vector<2x256xf32> to vector<2xf32>
    %50 = vector.shape_cast %49 : vector<2xf32> to vector<2x1xf32>
    %51 = arith.mulf %3, %13 : vector<2x256xf32>
    %cst_26 = arith.constant dense<0.000000e+00> : vector<2xf32>
    %52 = vector.multi_reduction <add>, %51, %cst_26 [1] : vector<2x256xf32> to vector<2xf32>
    %53 = vector.shape_cast %52 : vector<2xf32> to vector<2x1xf32>
    %54 = arith.mulf %3, %15 : vector<2x256xf32>
    %cst_27 = arith.constant dense<0.000000e+00> : vector<2xf32>
    %55 = vector.multi_reduction <add>, %54, %cst_27 [1] : vector<2x256xf32> to vector<2xf32>
    %56 = vector.shape_cast %55 : vector<2xf32> to vector<2x1xf32>
    %57 = arith.mulf %5, %9 : vector<2x256xf32>
    %cst_28 = arith.constant dense<0.000000e+00> : vector<2xf32>
    %58 = vector.multi_reduction <add>, %57, %cst_28 [1] : vector<2x256xf32> to vector<2xf32>
    %59 = vector.shape_cast %58 : vector<2xf32> to vector<2x1xf32>
    %60 = arith.mulf %5, %11 : vector<2x256xf32>
    %cst_29 = arith.constant dense<0.000000e+00> : vector<2xf32>
    %61 = vector.multi_reduction <add>, %60, %cst_29 [1] : vector<2x256xf32> to vector<2xf32>
    %62 = vector.shape_cast %61 : vector<2xf32> to vector<2x1xf32>
    %63 = arith.mulf %5, %13 : vector<2x256xf32>
    %cst_30 = arith.constant dense<0.000000e+00> : vector<2xf32>
    %64 = vector.multi_reduction <add>, %63, %cst_30 [1] : vector<2x256xf32> to vector<2xf32>
    %65 = vector.shape_cast %64 : vector<2xf32> to vector<2x1xf32>
    %66 = arith.mulf %5, %15 : vector<2x256xf32>
    %cst_31 = arith.constant dense<0.000000e+00> : vector<2xf32>
    %67 = vector.multi_reduction <add>, %66, %cst_31 [1] : vector<2x256xf32> to vector<2xf32>
    %68 = vector.shape_cast %67 : vector<2xf32> to vector<2x1xf32>
    %69 = arith.mulf %7, %9 : vector<2x256xf32>
    %cst_32 = arith.constant dense<0.000000e+00> : vector<2xf32>
    %70 = vector.multi_reduction <add>, %69, %cst_32 [1] : vector<2x256xf32> to vector<2xf32>
    %71 = vector.shape_cast %70 : vector<2xf32> to vector<2x1xf32>
    %72 = arith.mulf %7, %11 : vector<2x256xf32>
    %cst_33 = arith.constant dense<0.000000e+00> : vector<2xf32>
    %73 = vector.multi_reduction <add>, %72, %cst_33 [1] : vector<2x256xf32> to vector<2xf32>
    %74 = vector.shape_cast %73 : vector<2xf32> to vector<2x1xf32>
    %75 = arith.mulf %7, %13 : vector<2x256xf32>
    %cst_34 = arith.constant dense<0.000000e+00> : vector<2xf32>
    %76 = vector.multi_reduction <add>, %75, %cst_34 [1] : vector<2x256xf32> to vector<2xf32>
    %77 = vector.shape_cast %76 : vector<2xf32> to vector<2x1xf32>
    %78 = arith.mulf %7, %15 : vector<2x256xf32>
    %cst_35 = arith.constant dense<0.000000e+00> : vector<2xf32>
    %79 = vector.multi_reduction <add>, %78, %cst_35 [1] : vector<2x256xf32> to vector<2xf32>
    %80 = vector.shape_cast %79 : vector<2xf32> to vector<2x1xf32>
    %81 = tpu.concatenate %35, %38, %41, %44, %47, %50, %53, %56, %59, %62, %65, %68, %71, %74, %77, %80 in 1 : vector<2x1xf32>, vector<2x1xf32>, vector<2x1xf32>, vector<2x1xf32>, vector<2x1xf32>, vector<2x1xf32>, vector<2x1xf32>, vector<2x1xf32>, vector<2x1xf32>, vector<2x1xf32>, vector<2x1xf32>, vector<2x1xf32>, vector<2x1xf32>, vector<2x1xf32>, vector<2x1xf32>, vector<2x1xf32> -> vector<2x16xf32>
    %c0_36 = arith.constant 0 : index
    %c0_37 = arith.constant 0 : index
    %82 = vector.load %arg3[%c0_36, %c0_37] : memref<16x24xf32, #tpu.memory_space<vmem>>, vector<16x24xf32>
    %cst_38 = arith.constant dense<0.000000e+00> : vector<2x24xf32>
    %83 = tpu.matmul %81, %82, %cst_38 {dimension_numbers = #tpu.dot_dimension_numbers<[1], [0], [0], [1], [0, 0, 1, 1], [], []>} : vector<2x16xf32>, vector<16x24xf32>, vector<2x24xf32> -> vector<2x24xf32>
    %cst_39 = arith.constant 0.001953125 : f32
    %84 = vector.broadcast %cst_39 : f32 to vector<2x24xf32>
    %85 = arith.mulf %84, %83 : vector<2x24xf32>
    %cst_40 = arith.constant dense<0xFF800000> : vector<2xf32>
    %86 = vector.multi_reduction <maximumf>, %85, %cst_40 [1] : vector<2x24xf32> to vector<2xf32>
    %87 = vector.shape_cast %86 : vector<2xf32> to vector<2x1xf32>
    %88 = vector.broadcast %87 : vector<2x1xf32> to vector<2x24xf32>
    %89 = arith.subf %85, %88 : vector<2x24xf32>
    %90 = math.exp %89 : vector<2x24xf32>
    %cst_41 = arith.constant dense<0.000000e+00> : vector<2xf32>
    %91 = vector.multi_reduction <add>, %90, %cst_41 [1] : vector<2x24xf32> to vector<2xf32>
    %92 = vector.shape_cast %91 : vector<2xf32> to vector<2x1xf32>
    %93 = math.log %92 : vector<2x1xf32>
    %94 = arith.addf %87, %93 : vector<2x1xf32>
    %cst_42 = arith.constant 2.400000e+01 : f32
    %95 = math.log %cst_42 : f32
    %cst_43 = arith.constant 9.765625E-4 : f32
    %96 = vector.broadcast %cst_43 : f32 to vector<2x1xf32>
    %97 = arith.mulf %96, %32 : vector<2x1xf32>
    %98 = vector.broadcast %95 : f32 to vector<2x1xf32>
    %99 = arith.addf %98, %97 : vector<2x1xf32>
    %100 = arith.subf %99, %94 : vector<2x1xf32>
    %101 = vector.shape_cast %100 : vector<2x1xf32> to vector<2x1xf32>
    %102 = vector.broadcast %101 : vector<2x1xf32> to vector<2x128xf32>
    %c0_44 = arith.constant 0 : index
    %c0_45 = arith.constant 0 : index
    %103 = vector.load %arg4[%c0_44, %c0_45] : memref<2x128xf32, #tpu.memory_space<vmem>>, vector<2x128xf32>
    tpu.vector_store %arg4[%c0_44, %c0_45], %102 {strides = array<i32>} : memref<2x128xf32, #tpu.memory_space<vmem>>, vector<2x128xf32>,
    return
  }
  func.func @transform_0(%arg0: i32) -> (i32, i32, i32) {
    %c0_i32 = arith.constant 0 : i32
    %c0_i32_0 = arith.constant 0 : i32
    %c0_i32_1 = arith.constant 0 : i32
    return %arg0, %c0_i32, %c0_i32_0 : i32, i32, i32
  }
  func.func @transform_1(%arg0: i32) -> (i32, i32, i32) {
    %c0_i32 = arith.constant 0 : i32
    %c0_i32_0 = arith.constant 0 : i32
    %c0_i32_1 = arith.constant 0 : i32
    return %arg0, %c0_i32, %c0_i32_0 : i32, i32, i32
  }
  func.func @transform_2(%arg0: i32) -> (i32, i32) {
    %c0_i32 = arith.constant 0 : i32
    %c0_i32_0 = arith.constant 0 : i32
    %c0_i32_1 = arith.constant 0 : i32
    return %c0_i32, %c0_i32_0 : i32, i32
  }
  func.func @transform_3(%arg0: i32) -> (i32, i32) {
    %c0_i32 = arith.constant 0 : i32
    %c0_i32_0 = arith.constant 0 : i32
    return %arg0, %c0_i32 : i32, i32
  }
}

</mosaic_0001>

<llo_original>
// kernel: tpu_custom_call.1
$region0: #{tpu_custom_call.1}
  #allocation0 [shape = 'u32[]', space=smem, size = 0x4, offset = 0x4, fixed_abs, tag = 'smem constant byte address 0x4 - core index']
  #allocation1 [shape = 'u32[144,128]{1,0:T(1,128)}', space=vmem, size = 0x12000, scoped, tag = 'internal scratch']
  %s0 = inlined_call_operand.hbm [shape: f32[2,4,256], index: 0, kind: input, shape index: {}]
  %s1 = inlined_call_operand.hbm [shape: f32[2,4,256], index: 1, kind: input, shape index: {}]
  %s2 = inlined_call_operand.hbm [shape: f32[16,24], index: 2, kind: input, shape index: {}]
  %s3 = inlined_call_operand.hbm [shape: f32[2,128], index: 3, kind: output, shape index: {}]
  %s4 = sld [smem:[#allocation0]]
  $region34: #{tpu_custom_call.1} parent=0
    _
  %s6 = ssub.s32 1, %s4
  %s7 = scalar_select 0, %s6, %s4
  $region1: #{tpu_custom_call.1} parent=0
    #allocation2 [shape = 'u8[8192]{0}', space=vmem, size = 0x2000, scoped, tag = 'input window, operand 0, single buffered']
    #allocation3 [shape = 's32[1]{0}', space=sflag, size = 0x4, scoped, tag = 'scoped memory for tpu_custom_call.1']
    #allocation4 [shape = 's32[1]{0}', space=sflag, size = 0x4, scoped, tag = 'scoped memory for tpu_custom_call.1']
    #allocation5 [shape = 'u8[8192]{0}', space=vmem, size = 0x2000, scoped, tag = 'input window, operand 1, single buffered']
    #allocation6 [shape = 's32[1]{0}', space=sflag, size = 0x4, scoped, tag = 'scoped memory for tpu_custom_call.1']
    #allocation7 [shape = 'u8[8192]{0}', space=vmem, size = 0x2000, scoped, tag = 'input window, operand 2, single buffered']
    #allocation8 [shape = 'u8[1024]{0}', space=vmem, size = 0x400, scoped, tag = 'output window, operand 0, single buffered']
    %8 = vsyncpa [#allocation3], 0
    %9 = vsyncpa [#allocation6], 0
    %10 = vsyncpa [#allocation4], 0
    // Predicated region
    $region2: #{tpu_custom_call.1} parent=1 // pred_check
      _
    $region3: #{tpu_custom_call.1} parent=1 // pred_check_branch
      %12 = sbr.rel (0) target = $region5
    $region4: #{tpu_custom_call.1} parent=1 // pred_region
      %s14 = ssub.s32 256, 256
      %15 = vsyncadd [#allocation3], %s14
      %s16 = sshll.u32 [#allocation2], 4
      %s17 = int_to_ptr.vmem [resolvable:$true] %s16
      %22 = dma.hbm_to_vmem [thread:$0]  %s0, 256, %s17, [#allocation3], 128, 128, 8
    $region5: #{tpu_custom_call.1} parent=1 // pred_fallthru
      _
    // Predicated region
    $region6: #{tpu_custom_call.1} parent=1 // pred_check
      _
    $region7: #{tpu_custom_call.1} parent=1 // pred_check_branch
      %24 = sbr.rel (0) target = $region9
    $region8: #{tpu_custom_call.1} parent=1 // pred_region
      %s26 = ssub.s32 256, 256
      %27 = vsyncadd [#allocation6], %s26
      %s28 = sshll.u32 [#allocation5], 4
      %s29 = int_to_ptr.vmem [resolvable:$true] %s28
      %34 = dma.hbm_to_vmem [thread:$0]  %s1, 256, %s29, [#allocation6], 128, 128, 8
    $region9: #{tpu_custom_call.1} parent=1 // pred_fallthru
      _
    // Predicated region
    $region10: #{tpu_custom_call.1} parent=1 // pred_check
      _
    $region11: #{tpu_custom_call.1} parent=1 // pred_check_branch
      %36 = sbr.rel (0) target = $region13
    $region12: #{tpu_custom_call.1} parent=1 // pred_region
      %s38 = ssub.s32 256, 256
      %39 = vsyncadd [#allocation6], %s38
      %s40 = sshll.u32 [#allocation7], 4
      %s41 = int_to_ptr.vmem [resolvable:$true] %s40
      %46 = dma.hbm_to_vmem [thread:$0]  %s2, 256, %s41, [#allocation6], 128, 128, 8
    $region13: #{tpu_custom_call.1} parent=1 // pred_fallthru
      _
    // Predicated region
    $region14: #{tpu_custom_call.1} parent=1 // pred_check
      _
    $region15: #{tpu_custom_call.1} parent=1 // pred_check_branch
      %48 = sbr.rel (0) target = $region17
    $region16: #{tpu_custom_call.1} parent=1 // pred_region
      %49 = dma.done [#allocation3], 256
    $region17: #{tpu_custom_call.1} parent=1 // pred_fallthru
      _
    // Predicated region
    $region18: #{tpu_custom_call.1} parent=1 // pred_check
      _
    $region19: #{tpu_custom_call.1} parent=1 // pred_check_branch
      %51 = sbr.rel (0) target = $region21
    $region20: #{tpu_custom_call.1} parent=1 // pred_region
      %52 = dma.done [#allocation6], 256
    $region21: #{tpu_custom_call.1} parent=1 // pred_fallthru
      _
    // Predicated region
    $region22: #{tpu_custom_call.1} parent=1 // pred_check
      _
    $region23: #{tpu_custom_call.1} parent=1 // pred_check_branch
      %54 = sbr.rel (0) target = $region25
    $region24: #{tpu_custom_call.1} parent=1 // pred_region
      %55 = dma.done [#allocation6], 256
    $region25: #{tpu_custom_call.1} parent=1 // pred_fallthru
      _
    %v56 = vld [vmem:[#allocation2] ss:$4 sm:$0x3]
    %s57 = scalar_lea.vmem [#allocation2], 8
    %v58 = vld [vmem:[%s57] ss:$4 sm:$0x3]
    %s59 = scalar_lea.vmem [#allocation2], 1
    %v60 = vld [vmem:[%s59] ss:$4 sm:$0x3]
    %s61 = scalar_lea.vmem [#allocation2], 9
    %v62 = vld [vmem:[%s61] ss:$4 sm:$0x3]
    %s63 = scalar_lea.vmem [#allocation2], 2
    %v64 = vld [vmem:[%s63] ss:$4 sm:$0x3]
    %s65 = scalar_lea.vmem [#allocation2], 10
    %v66 = vld [vmem:[%s65] ss:$4 sm:$0x3]
    %s67 = scalar_lea.vmem [#allocation2], 3
    %v68 = vld [vmem:[%s67] ss:$4 sm:$0x3]
    %s69 = scalar_lea.vmem [#allocation2], 11
    %v70 = vld [vmem:[%s69] ss:$4 sm:$0x3]
    %v71 = vld [vmem:[#allocation5] ss:$4 sm:$0x3]
    %s72 = scalar_lea.vmem [#allocation5], 8
    %v73 = vld [vmem:[%s72] ss:$4 sm:$0x3]
    %s74 = scalar_lea.vmem [#allocation5], 1
    %v75 = vld [vmem:[%s74] ss:$4 sm:$0x3]
    %s76 = scalar_lea.vmem [#allocation5], 9
    %v77 = vld [vmem:[%s76] ss:$4 sm:$0x3]
    %s78 = scalar_lea.vmem [#allocation5], 2
    %v79 = vld [vmem:[%s78] ss:$4 sm:$0x3]
    %s80 = scalar_lea.vmem [#allocation5], 10
    %v81 = vld [vmem:[%s80] ss:$4 sm:$0x3]
    %s82 = scalar_lea.vmem [#allocation5], 3
    %v83 = vld [vmem:[%s82] ss:$4 sm:$0x3]
    %s84 = scalar_lea.vmem [#allocation5], 11
    %v85 = vld [vmem:[%s84] ss:$4 sm:$0x3]
    %v86 = vmul.f32 %v56, %v56
    %v87 = vmul.f32 %v58, %v58
    %v88 = vmul.f32 %v60, %v60
    %v89 = vmul.f32 %v62, %v62
    %v90 = vadd.f32 %v86, %v88
    %v91 = vadd.f32 %v87, %v89
    %v92 = vmul.f32 %v64, %v64
    %v93 = vmul.f32 %v66, %v66
    %v94 = vadd.f32 %v90, %v92
    %v95 = vadd.f32 %v91, %v93
    %v96 = vmul.f32 %v68, %v68
    %v97 = vmul.f32 %v70, %v70
    %v98 = vadd.f32 %v94, %v96
    %v99 = vadd.f32 %v95, %v97
    %v100 = vmul.f32 %v71, %v71
    %v101 = vmul.f32 %v73, %v73
    %v102 = vadd.f32 %v98, %v100
    %v103 = vadd.f32 %v99, %v101
    %v104 = vmul.f32 %v75, %v75
    %v105 = vmul.f32 %v77, %v77
    %v106 = vadd.f32 %v102, %v104
    %v107 = vadd.f32 %v103, %v105
    %v108 = vmul.f32 %v79, %v79
    %v109 = vmul.f32 %v81, %v81
    %v110 = vadd.f32 %v106, %v108
    %v111 = vadd.f32 %v107, %v109
    %v112 = vmul.f32 %v83, %v83
    %v113 = vmul.f32 %v85, %v85
    %v114 = vadd.f32 %v110, %v112
    %v115 = vadd.f32 %v111, %v113
    %v118 = vcombine.low %v114, %v115
    %v120 = vunpack.c.l.s4 1966171168
    %v121 = vunpack.c.0.s8 %v120
    %v122 = vlaneseq
    %v123 = vshrl.u32 %v122, 7
    %v124 = vsub.s32 %v121, %v123
    %v125 = vrot.slane %v118, %v124
    %v126 = vcombine.high %v125, %v125
    %v128 = vunpack.c.l.s4 1966171168
    %v129 = vunpack.c.0.s8 %v128
    %v130 = vlaneseq
    %v131 = vshrl.u32 %v130, 7
    %v132 = vsub.s32 %v129, %v131
    %v133 = vrot.slane %v125, %v132
    %v135 = vunpack.c.l.s4 1966171168
    %v136 = vunpack.c.0.s8 %v135
    %v137 = vlaneseq
    %v138 = vshrl.u32 %v137, 7
    %v139 = vsub.s32 %v136, %v138
    %v140 = vrot.slane %v126, %v139
    %vm143 = vcmask 1041408
    %v144 = vsel %vm143, %v133, 0.0
    %v145 = vsel %vm143, %v140, 0.0
    %v146 = vadd.f32 %v144, %v145
    %147 = vadd.xlane.f32.xlu0 %v146
    %v148 = vpop.xlane.xlu0 %147
    %v149 = vmul.f32 %v56, %v71
    %v150 = vmul.f32 %v58, %v73
    %v153 = vcombine.low %v149, %v150
    %v155 = vunpack.c.l.s4 1966171168
    %v156 = vunpack.c.0.s8 %v155
    %v157 = vlaneseq
    %v158 = vshrl.u32 %v157, 7
    %v159 = vsub.s32 %v156, %v158
    %v160 = vrot.slane %v153, %v159
    %v161 = vcombine.high %v160, %v160
    %v163 = vunpack.c.l.s4 1966171168
    %v164 = vunpack.c.0.s8 %v163
    %v165 = vlaneseq
    %v166 = vshrl.u32 %v165, 7
    %v167 = vsub.s32 %v164, %v166
    %v168 = vrot.slane %v160, %v167
    %v170 = vunpack.c.l.s4 1966171168
    %v171 = vunpack.c.0.s8 %v170
    %v172 = vlaneseq
    %v173 = vshrl.u32 %v172, 7
    %v174 = vsub.s32 %v171, %v173
    %v175 = vrot.slane %v161, %v174
    %v178 = vsel %vm143, %v168, 0.0
    %v179 = vsel %vm143, %v175, 0.0
    %v180 = vadd.f32 %v178, %v179
    %181 = vadd.xlane.f32.xlu0 %v180
    %v182 = vpop.xlane.xlu0 %181
    %v183 = vmul.f32 %v56, %v75
    %v184 = vmul.f32 %v58, %v77
    %v187 = vcombine.low %v183, %v184
    %v189 = vunpack.c.l.s4 1966171168
    %v190 = vunpack.c.0.s8 %v189
    %v191 = vlaneseq
    %v192 = vshrl.u32 %v191, 7
    %v193 = vsub.s32 %v190, %v192
    %v194 = vrot.slane %v187, %v193
    %v195 = vcombine.high %v194, %v194
    %v197 = vunpack.c.l.s4 1966171168
    %v198 = vunpack.c.0.s8 %v197
    %v199 = vlaneseq
    %v200 = vshrl.u32 %v199, 7
    %v201 = vsub.s32 %v198, %v200
    %v202 = vrot.slane %v194, %v201
    %v204 = vunpack.c.l.s4 1966171168
    %v205 = vunpack.c.0.s8 %v204
    %v206 = vlaneseq
    %v207 = vshrl.u32 %v206, 7
    %v208 = vsub.s32 %v205, %v207
    %v209 = vrot.slane %v195, %v208
    %v212 = vsel %vm143, %v202, 0.0
    %v213 = vsel %vm143, %v209, 0.0
    %v214 = vadd.f32 %v212, %v213
    %215 = vadd.xlane.f32.xlu0 %v214
    %v216 = vpop.xlane.xlu0 %215
    %v217 = vmul.f32 %v56, %v79
    %v218 = vmul.f32 %v58, %v81
    %v221 = vcombine.low %v217, %v218
    %v223 = vunpack.c.l.s4 1966171168
    %v224 = vunpack.c.0.s8 %v223
    %v225 = vlaneseq
    %v226 = vshrl.u32 %v225, 7
    %v227 = vsub.s32 %v224, %v226
    %v228 = vrot.slane %v221, %v227
    %v229 = vcombine.high %v228, %v228
    %v231 = vunpack.c.l.s4 1966171168
    %v232 = vunpack.c.0.s8 %v231
    %v233 = vlaneseq
    %v234 = vshrl.u32 %v233, 7
    %v235 = vsub.s32 %v232, %v234
    %v236 = vrot.slane %v228, %v235
    %v238 = vunpack.c.l.s4 1966171168
    %v239 = vunpack.c.0.s8 %v238
    %v240 = vlaneseq
    %v241 = vshrl.u32 %v240, 7
    %v242 = vsub.s32 %v239, %v241
    %v243 = vrot.slane %v229, %v242
    %v246 = vsel %vm143, %v236, 0.0
    %v247 = vsel %vm143, %v243, 0.0
    %v248 = vadd.f32 %v246, %v247
    %249 = vadd.xlane.f32.xlu0 %v248
    %v250 = vpop.xlane.xlu0 %249
    %v251 = vmul.f32 %v56, %v83
    %v252 = vmul.f32 %v58, %v85
    %v255 = vcombine.low %v251, %v252
    %v257 = vunpack.c.l.s4 1966171168
    %v258 = vunpack.c.0.s8 %v257
    %v259 = vlaneseq
    %v260 = vshrl.u32 %v259, 7
    %v261 = vsub.s32 %v258, %v260
    %v262 = vrot.slane %v255, %v261
    %v263 = vcombine.high %v262, %v262
    %v265 = vunpack.c.l.s4 1966171168
    %v266 = vunpack.c.0.s8 %v265
    %v267 = vlaneseq
    %v268 = vshrl.u32 %v267, 7
    %v269 = vsub.s32 %v266, %v268
    %v270 = vrot.slane %v262, %v269
    %v272 = vunpack.c.l.s4 1966171168
    %v273 = vunpack.c.0.s8 %v272
    %v274 = vlaneseq
    %v275 = vshrl.u32 %v274, 7
    %v276 = vsub.s32 %v273, %v275
    %v277 = vrot.slane %v263, %v276
    %v280 = vsel %vm143, %v270, 0.0
    %v281 = vsel %vm143, %v277, 0.0
    %v282 = vadd.f32 %v280, %v281
    %283 = vadd.xlane.f32.xlu0 %v282
    %v284 = vpop.xlane.xlu0 %283
    %v285 = vmul.f32 %v60, %v71
    %v286 = vmul.f32 %v62, %v73
    %v289 = vcombine.low %v285, %v286
    %v291 = vunpack.c.l.s4 1966171168
    %v292 = vunpack.c.0.s8 %v291
    %v293 = vlaneseq
    %v294 = vshrl.u32 %v293, 7
    %v295 = vsub.s32 %v292, %v294
    %v296 = vrot.slane %v289, %v295
    %v297 = vcombine.high %v296, %v296
    %v299 = vunpack.c.l.s4 1966171168
    %v300 = vunpack.c.0.s8 %v299
    %v301 = vlaneseq
    %v302 = vshrl.u32 %v301, 7
    %v303 = vsub.s32 %v300, %v302
    %v304 = vrot.slane %v296, %v303
    %v306 = vunpack.c.l.s4 1966171168
    %v307 = vunpack.c.0.s8 %v306
    %v308 = vlaneseq
    %v309 = vshrl.u32 %v308, 7
    %v310 = vsub.s32 %v307, %v309
    %v311 = vrot.slane %v297, %v310
    %v314 = vsel %vm143, %v304, 0.0
    %v315 = vsel %vm143, %v311, 0.0
    %v316 = vadd.f32 %v314, %v315
    %317 = vadd.xlane.f32.xlu0 %v316
    %v318 = vpop.xlane.xlu0 %317
    %v319 = vmul.f32 %v60, %v75
    %v320 = vmul.f32 %v62, %v77
    %v323 = vcombine.low %v319, %v320
    %v325 = vunpack.c.l.s4 1966171168
    %v326 = vunpack.c.0.s8 %v325
    %v327 = vlaneseq
    %v328 = vshrl.u32 %v327, 7
    %v329 = vsub.s32 %v326, %v328
    %v330 = vrot.slane %v323, %v329
    %v331 = vcombine.high %v330, %v330
    %v333 = vunpack.c.l.s4 1966171168
    %v334 = vunpack.c.0.s8 %v333
    %v335 = vlaneseq
    %v336 = vshrl.u32 %v335, 7
    %v337 = vsub.s32 %v334, %v336
    %v338 = vrot.slane %v330, %v337
    %v340 = vunpack.c.l.s4 1966171168
    %v341 = vunpack.c.0.s8 %v340
    %v342 = vlaneseq
    %v343 = vshrl.u32 %v342, 7
    %v344 = vsub.s32 %v341, %v343
    %v345 = vrot.slane %v331, %v344
    %v348 = vsel %vm143, %v338, 0.0
    %v349 = vsel %vm143, %v345, 0.0
    %v350 = vadd.f32 %v348, %v349
    %351 = vadd.xlane.f32.xlu0 %v350
    %v352 = vpop.xlane.xlu0 %351
    %v353 = vmul.f32 %v60, %v79
    %v354 = vmul.f32 %v62, %v81
    %v357 = vcombine.low %v353, %v354
    %v359 = vunpack.c.l.s4 1966171168
    %v360 = vunpack.c.0.s8 %v359
    %v361 = vlaneseq
    %v362 = vshrl.u32 %v361, 7
    %v363 = vsub.s32 %v360, %v362
    %v364 = vrot.slane %v357, %v363
    %v365 = vcombine.high %v364, %v364
    %v367 = vunpack.c.l.s4 1966171168
    %v368 = vunpack.c.0.s8 %v367
    %v369 = vlaneseq
    %v370 = vshrl.u32 %v369, 7
    %v371 = vsub.s32 %v368, %v370
    %v372 = vrot.slane %v364, %v371
    %v374 = vunpack.c.l.s4 1966171168
    %v375 = vunpack.c.0.s8 %v374
    %v376 = vlaneseq
    %v377 = vshrl.u32 %v376, 7
    %v378 = vsub.s32 %v375, %v377
    %v379 = vrot.slane %v365, %v378
    %v382 = vsel %vm143, %v372, 0.0
    %v383 = vsel %vm143, %v379, 0.0
    %v384 = vadd.f32 %v382, %v383
    %385 = vadd.xlane.f32.xlu0 %v384
    %v386 = vpop.xlane.xlu0 %385
    %v387 = vmul.f32 %v60, %v83
    %v388 = vmul.f32 %v62, %v85
    %v391 = vcombine.low %v387, %v388
    %v393 = vunpack.c.l.s4 1966171168
    %v394 = vunpack.c.0.s8 %v393
    %v395 = vlaneseq
    %v396 = vshrl.u32 %v395, 7
    %v397 = vsub.s32 %v394, %v396
    %v398 = vrot.slane %v391, %v397
    %v399 = vcombine.high %v398, %v398
    %v401 = vunpack.c.l.s4 1966171168
    %v402 = vunpack.c.0.s8 %v401
    %v403 = vlaneseq
    %v404 = vshrl.u32 %v403, 7
    %v405 = vsub.s32 %v402, %v404
    %v406 = vrot.slane %v398, %v405
    %v408 = vunpack.c.l.s4 1966171168
    %v409 = vunpack.c.0.s8 %v408
    %v410 = vlaneseq
    %v411 = vshrl.u32 %v410, 7
    %v412 = vsub.s32 %v409, %v411
    %v413 = vrot.slane %v399, %v412
    %v416 = vsel %vm143, %v406, 0.0
    %v417 = vsel %vm143, %v413, 0.0
    %v418 = vadd.f32 %v416, %v417
    %419 = vadd.xlane.f32.xlu0 %v418
    %v420 = vpop.xlane.xlu0 %419
    %v421 = vmul.f32 %v64, %v71
    %v422 = vmul.f32 %v66, %v73
    %v425 = vcombine.low %v421, %v422
    %v427 = vunpack.c.l.s4 1966171168
    %v428 = vunpack.c.0.s8 %v427
    %v429 = vlaneseq
    %v430 = vshrl.u32 %v429, 7
    %v431 = vsub.s32 %v428, %v430
    %v432 = vrot.slane %v425, %v431
    %v433 = vcombine.high %v432, %v432
    %v435 = vunpack.c.l.s4 1966171168
    %v436 = vunpack.c.0.s8 %v435
    %v437 = vlaneseq
    %v438 = vshrl.u32 %v437, 7
    %v439 = vsub.s32 %v436, %v438
    %v440 = vrot.slane %v432, %v439
    %v442 = vunpack.c.l.s4 1966171168
    %v443 = vunpack.c.0.s8 %v442
    %v444 = vlaneseq
    %v445 = vshrl.u32 %v444, 7
    %v446 = vsub.s32 %v443, %v445
    %v447 = vrot.slane %v433, %v446
    %v450 = vsel %vm143, %v440, 0.0
    %v451 = vsel %vm143, %v447, 0.0
    %v452 = vadd.f32 %v450, %v451
    %453 = vadd.xlane.f32.xlu0 %v452
    %v454 = vpop.xlane.xlu0 %453
    %v455 = vmul.f32 %v64, %v75
    %v456 = vmul.f32 %v66, %v77
    %v459 = vcombine.low %v455, %v456
    %v461 = vunpack.c.l.s4 1966171168
    %v462 = vunpack.c.0.s8 %v461
    %v463 = vlaneseq
    %v464 = vshrl.u32 %v463, 7
    %v465 = vsub.s32 %v462, %v464
    %v466 = vrot.slane %v459, %v465
    %v467 = vcombine.high %v466, %v466
    %v469 = vunpack.c.l.s4 1966171168
    %v470 = vunpack.c.0.s8 %v469
    %v471 = vlaneseq
    %v472 = vshrl.u32 %v471, 7
    %v473 = vsub.s32 %v470, %v472
    %v474 = vrot.slane %v466, %v473
    %v476 = vunpack.c.l.s4 1966171168
    %v477 = vunpack.c.0.s8 %v476
    %v478 = vlaneseq
    %v479 = vshrl.u32 %v478, 7
    %v480 = vsub.s32 %v477, %v479
    %v481 = vrot.slane %v467, %v480
    %v484 = vsel %vm143, %v474, 0.0
    %v485 = vsel %vm143, %v481, 0.0
    %v486 = vadd.f32 %v484, %v485
    %487 = vadd.xlane.f32.xlu0 %v486
    %v488 = vpop.xlane.xlu0 %487
    %v489 = vmul.f32 %v64, %v79
    %v490 = vmul.f32 %v66, %v81
    %v493 = vcombine.low %v489, %v490
    %v495 = vunpack.c.l.s4 1966171168
    %v496 = vunpack.c.0.s8 %v495
    %v497 = vlaneseq
    %v498 = vshrl.u32 %v497, 7
    %v499 = vsub.s32 %v496, %v498
    %v500 = vrot.slane %v493, %v499
    %v501 = vcombine.high %v500, %v500
    %v503 = vunpack.c.l.s4 1966171168
    %v504 = vunpack.c.0.s8 %v503
    %v505 = vlaneseq
    %v506 = vshrl.u32 %v505, 7
    %v507 = vsub.s32 %v504, %v506
    %v508 = vrot.slane %v500, %v507
    %v510 = vunpack.c.l.s4 1966171168
    %v511 = vunpack.c.0.s8 %v510
    %v512 = vlaneseq
    %v513 = vshrl.u32 %v512, 7
    %v514 = vsub.s32 %v511, %v513
    %v515 = vrot.slane %v501, %v514
    %v518 = vsel %vm143, %v508, 0.0
    %v519 = vsel %vm143, %v515, 0.0
    %v520 = vadd.f32 %v518, %v519
    %521 = vadd.xlane.f32.xlu0 %v520
    %v522 = vpop.xlane.xlu0 %521
    %v523 = vmul.f32 %v64, %v83
    %v524 = vmul.f32 %v66, %v85
    %v527 = vcombine.low %v523, %v524
    %v529 = vunpack.c.l.s4 1966171168
    %v530 = vunpack.c.0.s8 %v529
    %v531 = vlaneseq
    %v532 = vshrl.u32 %v531, 7
    %v533 = vsub.s32 %v530, %v532
    %v534 = vrot.slane %v527, %v533
    %v535 = vcombine.high %v534, %v534
    %v537 = vunpack.c.l.s4 1966171168
    %v538 = vunpack.c.0.s8 %v537
    %v539 = vlaneseq
    %v540 = vshrl.u32 %v539, 7
    %v541 = vsub.s32 %v538, %v540
    %v542 = vrot.slane %v534, %v541
    %v544 = vunpack.c.l.s4 1966171168
    %v545 = vunpack.c.0.s8 %v544
    %v546 = vlaneseq
    %v547 = vshrl.u32 %v546, 7
    %v548 = vsub.s32 %v545, %v547
    %v549 = vrot.slane %v535, %v548
    %v552 = vsel %vm143, %v542, 0.0
    %v553 = vsel %vm143, %v549, 0.0
    %v554 = vadd.f32 %v552, %v553
    %555 = vadd.xlane.f32.xlu0 %v554
    %v556 = vpop.xlane.xlu0 %555
    %v557 = vmul.f32 %v68, %v71
    %v558 = vmul.f32 %v70, %v73
    %v561 = vcombine.low %v557, %v558
    %v563 = vunpack.c.l.s4 1966171168
    %v564 = vunpack.c.0.s8 %v563
    %v565 = vlaneseq
    %v566 = vshrl.u32 %v565, 7
    %v567 = vsub.s32 %v564, %v566
    %v568 = vrot.slane %v561, %v567
    %v569 = vcombine.high %v568, %v568
    %v571 = vunpack.c.l.s4 1966171168
    %v572 = vunpack.c.0.s8 %v571
    %v573 = vlaneseq
    %v574 = vshrl.u32 %v573, 7
    %v575 = vsub.s32 %v572, %v574
    %v576 = vrot.slane %v568, %v575
    %v578 = vunpack.c.l.s4 1966171168
    %v579 = vunpack.c.0.s8 %v578
    %v580 = vlaneseq
    %v581 = vshrl.u32 %v580, 7
    %v582 = vsub.s32 %v579, %v581
    %v583 = vrot.slane %v569, %v582
    %v586 = vsel %vm143, %v576, 0.0
    %v587 = vsel %vm143, %v583, 0.0
    %v588 = vadd.f32 %v586, %v587
    %589 = vadd.xlane.f32.xlu0 %v588
    %v590 = vpop.xlane.xlu0 %589
    %v591 = vmul.f32 %v68, %v75
    %v592 = vmul.f32 %v70, %v77
    %v595 = vcombine.low %v591, %v592
    %v597 = vunpack.c.l.s4 1966171168
    %v598 = vunpack.c.0.s8 %v597
    %v599 = vlaneseq
    %v600 = vshrl.u32 %v599, 7
    %v601 = vsub.s32 %v598, %v600
    %v602 = vrot.slane %v595, %v601
    %v603 = vcombine.high %v602, %v602
    %v605 = vunpack.c.l.s4 1966171168
    %v606 = vunpack.c.0.s8 %v605
    %v607 = vlaneseq
    %v608 = vshrl.u32 %v607, 7
    %v609 = vsub.s32 %v606, %v608
    %v610 = vrot.slane %v602, %v609
    %v612 = vunpack.c.l.s4 1966171168
    %v613 = vunpack.c.0.s8 %v612
    %v614 = vlaneseq
    %v615 = vshrl.u32 %v614, 7
    %v616 = vsub.s32 %v613, %v615
    %v617 = vrot.slane %v603, %v616
    %v620 = vsel %vm143, %v610, 0.0
    %v621 = vsel %vm143, %v617, 0.0
    %v622 = vadd.f32 %v620, %v621
    %623 = vadd.xlane.f32.xlu0 %v622
    %v624 = vpop.xlane.xlu0 %623
    %v625 = vmul.f32 %v68, %v79
    %v626 = vmul.f32 %v70, %v81
    %v629 = vcombine.low %v625, %v626
    %v631 = vunpack.c.l.s4 1966171168
    %v632 = vunpack.c.0.s8 %v631
    %v633 = vlaneseq
    %v634 = vshrl.u32 %v633, 7
    %v635 = vsub.s32 %v632, %v634
    %v636 = vrot.slane %v629, %v635
    %v637 = vcombine.high %v636, %v636
    %v639 = vunpack.c.l.s4 1966171168
    %v640 = vunpack.c.0.s8 %v639
    %v641 = vlaneseq
    %v642 = vshrl.u32 %v641, 7
    %v643 = vsub.s32 %v640, %v642
    %v644 = vrot.slane %v636, %v643
    %v646 = vunpack.c.l.s4 1966171168
    %v647 = vunpack.c.0.s8 %v646
    %v648 = vlaneseq
    %v649 = vshrl.u32 %v648, 7
    %v650 = vsub.s32 %v647, %v649
    %v651 = vrot.slane %v637, %v650
    %v654 = vsel %vm143, %v644, 0.0
    %v655 = vsel %vm143, %v651, 0.0
    %v656 = vadd.f32 %v654, %v655
    %657 = vadd.xlane.f32.xlu0 %v656
    %v658 = vpop.xlane.xlu0 %657
    %v659 = vmul.f32 %v68, %v83
    %v660 = vmul.f32 %v70, %v85
    %v663 = vcombine.low %v659, %v660
    %v665 = vunpack.c.l.s4 1966171168
    %v666 = vunpack.c.0.s8 %v665
    %v667 = vlaneseq
    %v668 = vshrl.u32 %v667, 7
    %v669 = vsub.s32 %v666, %v668
    %v670 = vrot.slane %v663, %v669
    %v671 = vcombine.high %v670, %v670
    %v673 = vunpack.c.l.s4 1966171168
    %v674 = vunpack.c.0.s8 %v673
    %v675 = vlaneseq
    %v676 = vshrl.u32 %v675, 7
    %v677 = vsub.s32 %v674, %v676
    %v678 = vrot.slane %v670, %v677
    %v680 = vunpack.c.l.s4 1966171168
    %v681 = vunpack.c.0.s8 %v680
    %v682 = vlaneseq
    %v683 = vshrl.u32 %v682, 7
    %v684 = vsub.s32 %v681, %v683
    %v685 = vrot.slane %v671, %v684
    %v688 = vsel %vm143, %v678, 0.0
    %v689 = vsel %vm143, %v685, 0.0
    %v690 = vadd.f32 %v688, %v689
    %691 = vadd.xlane.f32.xlu0 %v690
    %v692 = vpop.xlane.xlu0 %691
    %vm693 = vcmask 7168
    %v694 = vsel %vm693, %v182, %v216
    %vm695 = vcmask 15360
    %v696 = vsel %vm695, %v694, %v250
    %vm697 = vcmask 23552
    %v698 = vsel %vm697, %v696, %v284
    %vm699 = vcmask 31744
    %v700 = vsel %vm699, %v698, %v318
    %vm701 = vcmask 39936
    %v702 = vsel %vm701, %v700, %v352
    %vm703 = vcmask 48128
    %v704 = vsel %vm703, %v702, %v386
    %vm705 = vcmask 56320
    %v706 = vsel %vm705, %v704, %v420
    %vm707 = vcmask 64512
    %v708 = vsel %vm707, %v706, %v454
    %vm709 = vcmask 72704
    %v710 = vsel %vm709, %v708, %v488
    %vm711 = vcmask 80896
    %v712 = vsel %vm711, %v710, %v522
    %vm713 = vcmask 89088
    %v714 = vsel %vm713, %v712, %v556
    %vm715 = vcmask 97280
    %v716 = vsel %vm715, %v714, %v590
    %vm717 = vcmask 105472
    %v718 = vsel %vm717, %v716, %v624
    %vm719 = vcmask 113664
    %v720 = vsel %vm719, %v718, %v658
    %vm721 = vcmask 121856
    %v722 = vsel %vm721, %v720, %v692
    %v723 = vld [vmem:[#allocation7] sm:$0xff]
    %v724 = vld [vmem:[#allocation7 + $0x8] sm:$0xff]
    %vm725 = vcmask 130048
    %v727 = vsel %vm725, %v722, 0
    %729 = vmatprep.subr.mxu0 0.0
    %730 = vmatpush1.msra.mxu0 0.0
    %731 = vmatprep.subr.mxu0 0.0
    %732 = vmatpush1.msra.mxu0 0.0
    %733 = vmatprep.subr.mxu0 0.0
    %734 = vmatpush1.msra.mxu0 0.0
    %735 = vmatprep.subr.mxu0 0.0
    %736 = vmatpush1.msra.mxu0 0.0
    %737 = vmatprep.subr.mxu0 0.0
    %738 = vmatpush1.msra.mxu0 0.0
    %739 = vmatprep.subr.mxu0 0.0
    %740 = vmatpush1.msra.mxu0 0.0
    %741 = vmatprep.subr.mxu0 0.0
    %742 = vmatpush1.msra.mxu0 0.0
    %743 = vmatprep.subr.mxu0 0.0
    %744 = vmatpush1.msra.mxu0 0.0
    %745 = vmatprep.subr.mxu0 0.0
    %746 = vmatpush1.msra.mxu0 0.0
    %747 = vmatprep.subr.mxu0 0.0
    %748 = vmatpush1.msra.mxu0 0.0
    %749 = vmatprep.subr.mxu0 0.0
    %750 = vmatpush1.msra.mxu0 0.0
    %751 = vmatprep.subr.mxu0 0.0
    %752 = vmatpush1.msra.mxu0 0.0
    %753 = vmatprep.subr.mxu0 0.0
    %754 = vmatpush1.msra.mxu0 0.0
    %755 = vmatprep.subr.mxu0 0.0
    %756 = vmatpush1.msra.mxu0 0.0
    %757 = vmatprep.subr.mxu0 0.0
    %758 = vmatpush1.msra.mxu0 %v724
    %759 = vmatprep.subr.mxu0 0.0
    %760 = vmatpush1.msra.mxu0 %v723
    %761 = vmatprep.subr.mxu0 0.0
    %762 = vmatpush2.msra.mxu0 0.0
    %763 = vmatprep.subr.mxu0 0.0
    %764 = vmatpush2.msra.mxu0 0.0
    %765 = vmatprep.subr.mxu0 0.0
    %766 = vmatpush2.msra.mxu0 0.0
    %767 = vmatprep.subr.mxu0 0.0
    %768 = vmatpush2.msra.mxu0 0.0
    %769 = vmatprep.subr.mxu0 0.0
    %770 = vmatpush2.msra.mxu0 0.0
    %771 = vmatprep.subr.mxu0 0.0
    %772 = vmatpush2.msra.mxu0 0.0
    %773 = vmatprep.subr.mxu0 0.0
    %774 = vmatpush2.msra.mxu0 0.0
    %775 = vmatprep.subr.mxu0 0.0
    %776 = vmatpush2.msra.mxu0 0.0
    %777 = vmatprep.subr.mxu0 0.0
    %778 = vmatpush2.msra.mxu0 0.0
    %779 = vmatprep.subr.mxu0 0.0
    %780 = vmatpush2.msra.mxu0 0.0
    %781 = vmatprep.subr.mxu0 0.0
    %782 = vmatpush2.msra.mxu0 0.0
    %783 = vmatprep.subr.mxu0 0.0
    %784 = vmatpush2.msra.mxu0 0.0
    %785 = vmatprep.subr.mxu0 0.0
    %786 = vmatpush2.msra.mxu0 0.0
    %787 = vmatprep.subr.mxu0 0.0
    %788 = vmatpush2.msra.mxu0 0.0
    %789 = vmatprep.subr.mxu0 0.0
    %790 = vmatpush2.msra.mxu0 0.0
    %791 = vmatprep.subr.mxu0 0.0
    %792 = vmatpush2.msra.mxu0 0.0
    %793 = vmatprep.mubr.f32.mxu0 0.0
    %794 = vmatmul.mubr.f32.gmra.mxu0 %v727
    %v795 = vpop.f32.mrf.mxu0
    %v796 = vadd.f32 0.0, %v795
    %v797 = vpop.f32.mrf.mxu0
    %798 = vdwg.mxu0
    %v799 = vmul.f32 %v796, 0.001953125
    %vm800 = vcmask 189440
    %v801 = vsel %vm800, %v799, -inf
    %802 = vmax.xlane.f32.xlu0 %v801
    %v803 = vpop.xlane.xlu0 %802
    %v804 = vsub.f32 %v799, %v803
    %v805 = vmul.f32 %v804, 1.442695
    %v806 = vpow.pop %v805
    %v807 = vsel %vm800, %v806, 0.0
    %808 = vadd.xlane.f32.xlu0 %v807
    %v809 = vpop.xlane.xlu0 %808
    %v810 = vlog2.pop %v809
    %v811 = vmul.f32 %v810, 0.6931472
    %v812 = vadd.f32 %v803, %v811
    %v813 = vmul.f32 %v148, 0.0009765625
    %v814 = vadd.f32 %v813, 3.1780539
    %v815 = vsub.f32 %v814, %v812
    %816 = vst [vmem:[#allocation8] sm:$0x3] %v815
    // Predicated region
    $region26: #{tpu_custom_call.1} parent=1 // pred_check
      _
    $region27: #{tpu_custom_call.1} parent=1 // pred_check_branch
      %818 = sbr.rel (0) target = $region29
    $region28: #{tpu_custom_call.1} parent=1 // pred_region
      %s820 = ssub.s32 32, 32
      %821 = vsyncadd [#allocation4], %s820
      %s823 = sshll.u32 [#allocation8], 4
      %s824 = int_to_ptr.vmem [resolvable:$true] %s823
      %826 = dma.vmem_to_hbm [thread:$0]  %s824, 32, %s3, [#allocation4]
    $region29: #{tpu_custom_call.1} parent=1 // pred_fallthru
      _
    // Predicated region
    $region30: #{tpu_custom_call.1} parent=1 // pred_check
      _
    $region31: #{tpu_custom_call.1} parent=1 // pred_check_branch
      %828 = sbr.rel (0) target = $region33
    $region32: #{tpu_custom_call.1} parent=1 // pred_region
      %829 = dma.done [#allocation4], 32
    $region33: #{tpu_custom_call.1} parent=1 // pred_fallthru
      _
    %830 = vsyncpa [#allocation3], 1
    %831 = vsyncpa [#allocation6], 1
    %832 = vsyncpa [#allocation4], 1

</llo_original>
